<compile_context>
chip_gen: v7x
topology: tpu7x:2x2x1
jax: 0.10.0
libtpu: 0.0.40
codegen_flags: <defaults>
</compile_context>

<pallas_src>
import functools

import jax
import jax.numpy as jnp
import numpy as np
from jax.experimental import pallas as pl
from jax.experimental.pallas import tpu as pltpu


def _round_up(x, m):
    return ((x + m - 1) // m) * m


def _maybe_pad(x, pads):
    if all(lo == 0 and hi == 0 for lo, hi in pads):
        return x
    return jnp.pad(x, pads)


def _vmem_capacity_bytes():
    """Physical VMEM of the current TPU generation (conservative 64 MiB fallback = v7x)."""
    try:
        info = pltpu.get_tpu_info()
        for attr in ("vmem_capacity_bytes", "vmem_bytes", "vmem_size_bytes"):
            v = getattr(info, attr, None)
            if v:
                return int(v)
    except Exception:
        pass
    return 64 * 1024 * 1024


def _pick_dst_tile(n, R, f_pad, budget, y_resident):
    """Pick (tm, n_pad, vmem_need) so A's int8 double-buffer + resident Y + f32 output
    fit `budget`, preferring >= 2 dst tiles (2 TCs on v7x / megacore on v6e)."""
    n8 = _round_up(max(n, 8), 8)
    for tm in (1024, 512, 256, 128, 64, 32, 16, 8):
        if tm > n8:
            continue
        n_pad = _round_up(n8, tm)
        if n_pad // tm < 2 and n8 > 8 and tm > 8:
            continue  # insist on >= 2 dst tiles whenever the graph allows it
        y_bytes = (R * n_pad * f_pad * 2 if y_resident   # whole Y, single-buffered
                   else 2 * n_pad * f_pad * 2)           # one relation, double-buffered
        need = (2 * tm * n_pad                           # A int8, double-buffered
                + 2 * tm * f_pad * 4                     # output f32, double-buffered
                + 2 * R * tm * 4                         # inv_deg, double-buffered
                + f_pad * 4                              # bias
                + y_bytes)
        if need <= budget:
            return tm, n_pad, need
    tm = 8
    n_pad = _round_up(n8, tm)
    y_bytes = R * n_pad * f_pad * 2 if y_resident else 2 * n_pad * f_pad * 2
    return tm, n_pad, 2 * tm * n_pad + 2 * tm * f_pad * 4 + 2 * R * tm * 4 + f_pad * 4 + y_bytes


def rgcn_kernel(a_ref, y_ref, d_ref, b_ref, o_ref, *, y_resident):
    r = pl.program_id(1)

    @pl.when(r == 0)
    def _():
        o_ref[...] = jnp.zeros_like(o_ref)

    # A rows arrive as int8 {0,1}; widen to bf16 in-kernel (exact, VPU work hidden
    # under the A DMA -> half the HBM bytes of a bf16 A).
    a = a_ref[0].astype(jnp.bfloat16)             # (tm, n_pad)
    y = y_ref[r] if y_resident else y_ref[0]      # (n_pad, f_pad) bf16
    inv_deg = d_ref[r]                            # (tm, 1) f32, clamped >= 1 reciprocal

    # message passing (MXU, f32 accumulation) + right-norm + cross-relation sum
    agg = jnp.dot(a, y, preferred_element_type=jnp.float32)   # (tm, f_pad)
    o_ref[...] += agg * inv_deg

    @pl.when(r == pl.num_programs(1) - 1)
    def _():
        h = o_ref[...] + b_ref[...]           # + h_bias (broadcast (1, f_pad))
        o_ref[...] = jnp.maximum(h, 0.0)      # activation = ReLU; dropout p=0.0 -> identity
        # TODO(synk): self_loop=True branch (h + inputs @ loop_weight) not exercised (default False).


def rel_graph_conv_layer(A, X, W, h_bias):
    """A: [R, N, N] (dst, src) in {0,1}, X: [R, N, Fin], W: [R, Fin, Fout], h_bias: [Fout]
    -> [N, Fout]."""
    R, N, _ = A.shape
    Fout = W.shape[-1]
    f_pad = _round_up(Fout, 128)     # lane-dense output; deliberately NOT padded to 256

    cap = _vmem_capacity_bytes()
    budget = int(cap * 0.7)          # leave room for Mosaic internal scratch / pipelining

    # A as int8 (values {0,1}) -- no wide copy of the largest tensor in the wrapper.
    A_i8 = A if A.dtype == jnp.int8 else A.astype(jnp.int8)

    # norm='right': reciprocal in-degree from the UNpadded rows, clamped to >= 1.
    deg = jnp.sum(A_i8, axis=-1, keepdims=True, dtype=jnp.float32)      # [R, N, 1]
    inv_deg = 1.0 / jnp.maximum(deg, 1.0)

    # Fold the tiny per-relation projection (K=Fin) into one small XLA einsum; bf16 at
    # the MXU boundary.
    Y = jnp.einsum("rnf,rfo->rno", X, W).astype(jnp.bfloat16)           # [R, N, Fout]

    # Keep Y fully VMEM-resident when it fits comfortably (gated per generation).
    n8 = _round_up(max(N, 8), 8)
    y_resident = (R * n8 * f_pad * 2) <= budget // 2

    tm, n_pad, need = _pick_dst_tile(N, R, f_pad, budget, y_resident)
    pad_n = n_pad - N

    A_p = _maybe_pad(A_i8, ((0, 0), (0, pad_n), (0, pad_n)))                        # int8
    Y_p = _maybe_pad(Y, ((0, 0), (0, pad_n), (0, f_pad - Fout)))                    # bf16
    d_p = _maybe_pad(inv_deg, ((0, 0), (0, pad_n), (0, 0)))                         # f32
    b_p = _maybe_pad(h_bias.reshape(1, Fout).astype(jnp.float32),
                     ((0, 0), (0, f_pad - Fout)))

    if y_resident:
        y_spec = pl.BlockSpec((R, n_pad, f_pad), lambda i, r: (0, 0, 0),
                              pipeline_mode=pl.Buffered(1))     # fetched once, 1 buffer
    else:
        y_spec = pl.BlockSpec((1, n_pad, f_pad), lambda i, r: (r, 0, 0))

    vmem_limit = min(int(cap * 0.85), max(need + (8 << 20), 32 << 20))

    kernel = functools.partial(rgcn_kernel, y_resident=y_resident)

    out = pl.pallas_call(
        kernel,
        out_shape=jax.ShapeDtypeStruct((n_pad, f_pad), jnp.float32),
        grid_spec=pltpu.PrefetchScalarGridSpec(
            num_scalar_prefetch=0,
            grid=(n_pad // tm, R),
            in_specs=[
                pl.BlockSpec((1, tm, n_pad), lambda i, r: (r, i, 0)),    # A_r dst-tile rows (int8)
                y_spec,                                                  # Y (bf16), VMEM-resident
                pl.BlockSpec((R, tm, 1), lambda i, r: (0, i, 0)),        # 1/deg for all relations, tile i
                pl.BlockSpec((1, f_pad), lambda i, r: (0, 0),
                             pipeline_mode=pl.Buffered(1)),              # bias (padded)
            ],
            out_specs=pl.BlockSpec((tm, f_pad), lambda i, r: (i, 0)),    # resident accumulator over r
        ),
        compiler_params=pltpu.CompilerParams(
            dimension_semantics=("parallel", "arbitrary"),
            vmem_limit_bytes=vmem_limit,
        ),
    )(A_p, Y_p, d_p, b_p)

    return out[:N, :Fout]


def reference(A, X, W, h_bias):
    # Matches the kernel's numerics: Y rounded to bf16 at the MXU boundary (A is binary,
    # hence exact in any dtype), products/accumulation in f32.
    Af = A.astype(jnp.float32)
    Y = jnp.einsum("rnf,rfo->rno", X, W).astype(jnp.bfloat16).astype(jnp.float32)
    inv_deg = 1.0 / jnp.maximum(Af.sum(axis=-1, keepdims=True), 1.0)     # [R, N, 1]
    agg = jnp.einsum("rds,rsf->rdf", Af, Y,
                     precision=jax.lax.Precision.HIGHEST) * inv_deg      # [R, N, Fout]
    out = agg.sum(axis=0) + h_bias                                       # [N, Fout]
    return jax.nn.relu(out)


if __name__ == "__main__":
    # Module hyperparameters
    in_feat, out_feat = 16, 32
    rel_names = ["rel_a", "rel_b", "rel_c"]
    R = len(rel_names)
    num_bases = 2            # num_bases < len(rel_names) -> basis decomposition
    N = 50                   # deliberately unaligned: exercises padding + multi-dst-tile path

    key = jax.random.PRNGKey(0)
    k_adj, k_x, k_basis, k_coef = jax.random.split(key, 4)

    # Synthetic dense relation adjacencies A_r[dst, src] in {0,1}, built directly as int8
    # so no f32 copy of the largest tensor is ever materialized.
    A = jax.random.bernoulli(k_adj, p=0.4, shape=(R, N, N)).astype(jnp.int8)
    # Source-node features per relation (stands in for the per-ntype inputs dict)
    X = jax.random.normal(k_x, (R, N, in_feat), dtype=jnp.float32)

    # WeightBasis: W_r = sum_b coef[r, b] * basis[b]   (xavier_uniform, relu gain)
    gain = float(np.sqrt(2.0))
    limit = gain * float(np.sqrt(6.0 / (in_feat + out_feat)))
    basis = jax.random.uniform(k_basis, (num_bases, in_feat, out_feat),
                               minval=-limit, maxval=limit, dtype=jnp.float32)
    coef = jax.random.uniform(k_coef, (R, num_bases),
                              minval=-1.0, maxval=1.0, dtype=jnp.float32)
    W = jnp.einsum("rb,bio->rio", coef, basis)          # [R, in_feat, out_feat]

    # h_bias initialized to zeros (nn.init.zeros_)
    h_bias = jnp.zeros((out_feat,), dtype=jnp.float32)

    out = rel_graph_conv_layer(A, X, W, h_bias)
    out = jax.block_until_ready(out)

    ref = reference(A, X, W, h_bias)
    np.testing.assert_allclose(np.asarray(out), np.asarray(ref), rtol=5e-5, atol=5e-5)

    # Module returns a dict keyed by node type; here one destination node type.
    result = {"dst_ntype": out}
    assert result["dst_ntype"].shape == (N, out_feat)

    print("KERNEL_OK")
</pallas_src>

<mosaic_0001>
module attributes {stable_mosaic.version = 11 : i64} {
  func.func @rgcn_kernel(%arg0: i32, %arg1: i32, %arg2: memref<1x32x64xi8, #tpu.memory_space<vmem>>, %arg3: memref<3x64x128xbf16, #tpu.memory_space<vmem>>, %arg4: memref<3x32x1xf32, #tpu.memory_space<vmem>>, %arg5: memref<1x128xf32, #tpu.memory_space<vmem>>, %arg6: memref<32x128xf32, #tpu.memory_space<vmem>>) attributes {dimension_semantics = [#tpu.dimension_semantics<parallel>, #tpu.dimension_semantics<arbitrary>], iteration_bounds = array<i64: 2, 3>, scalar_prefetch = 0 : i64, scratch_operands = 0 : i64, tpu.core_type = #tpu.core_type<tc>, window_params = [{transform_indices = @transform_0, window_bounds = array<i64: 1, 32, 64>}, {pipeline_mode = #tpu.pipeline_mode<synchronous>, transform_indices = @transform_1, window_bounds = array<i64: 3, 64, 128>}, {transform_indices = @transform_2, window_bounds = array<i64: 3, 32, 1>}, {pipeline_mode = #tpu.pipeline_mode<synchronous>, transform_indices = @transform_3, window_bounds = array<i64: 1, 128>}, {transform_indices = @transform_4, window_bounds = array<i64: 32, 128>}]} {
    %c0_i32 = arith.constant 0 : i32
    %0 = arith.cmpi eq, %arg1, %c0_i32 : i32
    %1 = arith.extui %0 : i1 to i32
    %c0_i32_0 = arith.constant 0 : i32
    %2 = arith.cmpi ne, %1, %c0_i32_0 : i32
    scf.if %2 {
      %cst_12 = arith.constant 0.000000e+00 : f32
      %21 = vector.broadcast %cst_12 : f32 to vector<32x128xf32>
      %c0_13 = arith.constant 0 : index
      %c0_14 = arith.constant 0 : index
      %22 = vector.load %arg6[%c0_13, %c0_14] : memref<32x128xf32, #tpu.memory_space<vmem>>, vector<32x128xf32>
      tpu.vector_store %arg6[%c0_13, %c0_14], %21 {strides = array<i32>} : memref<32x128xf32, #tpu.memory_space<vmem>>, vector<32x128xf32>,
    } else {
    }
    %c0 = arith.constant 0 : index
    %c0_1 = arith.constant 0 : index
    %c0_2 = arith.constant 0 : index
    %3 = vector.load %arg2[%c0, %c0_1, %c0_2] : memref<1x32x64xi8, #tpu.memory_space<vmem>>, vector<1x32x64xi8>
    %4 = vector.shape_cast %3 : vector<1x32x64xi8> to vector<32x64xi8>
    %5 = arith.sitofp %4 : vector<32x64xi8> to vector<32x64xbf16>
    %6 = arith.index_cast %arg1 : i32 to index
    %c0_3 = arith.constant 0 : index
    %c0_4 = arith.constant 0 : index
    %7 = vector.load %arg3[%6, %c0_3, %c0_4] : memref<3x64x128xbf16, #tpu.memory_space<vmem>>, vector<1x64x128xbf16>
    %8 = vector.shape_cast %7 : vector<1x64x128xbf16> to vector<64x128xbf16>
    %9 = arith.index_cast %arg1 : i32 to index
    %c0_5 = arith.constant 0 : index
    %c0_6 = arith.constant 0 : index
    %10 = vector.load %arg4[%9, %c0_5, %c0_6] : memref<3x32x1xf32, #tpu.memory_space<vmem>>, vector<1x32x1xf32>
    %11 = vector.shape_cast %10 : vector<1x32x1xf32> to vector<32x1xf32>
    %cst = arith.constant dense<0.000000e+00> : vector<32x128xf32>
    %12 = tpu.matmul %5, %8, %cst {dimension_numbers = #tpu.dot_dimension_numbers<[1], [0], [0], [1], [0, 0, 1, 1], [], []>} : vector<32x64xbf16>, vector<64x128xbf16>, vector<32x128xf32> -> vector<32x128xf32>
    %c0_7 = arith.constant 0 : index
    %c0_8 = arith.constant 0 : index
    %13 = vector.load %arg6[%c0_7, %c0_8] : memref<32x128xf32, #tpu.memory_space<vmem>>, vector<32x128xf32>
    %14 = vector.broadcast %11 : vector<32x1xf32> to vector<32x128xf32>
    %15 = arith.mulf %12, %14 : vector<32x128xf32>
    %16 = arith.addf %13, %15 : vector<32x128xf32>
    %c0_9 = arith.constant 0 : index
    %c0_10 = arith.constant 0 : index
    %17 = vector.load %arg6[%c0_9, %c0_10] : memref<32x128xf32, #tpu.memory_space<vmem>>, vector<32x128xf32>
    tpu.vector_store %arg6[%c0_9, %c0_10], %16 {strides = array<i32>} : memref<32x128xf32, #tpu.memory_space<vmem>>, vector<32x128xf32>,
    %c2_i32 = arith.constant 2 : i32
    %18 = arith.cmpi eq, %arg1, %c2_i32 : i32
    %19 = arith.extui %18 : i1 to i32
    %c0_i32_11 = arith.constant 0 : i32
    %20 = arith.cmpi ne, %19, %c0_i32_11 : i32
    scf.if %20 {
      %c0_12 = arith.constant 0 : index
      %c0_13 = arith.constant 0 : index
      %21 = vector.load %arg6[%c0_12, %c0_13] : memref<32x128xf32, #tpu.memory_space<vmem>>, vector<32x128xf32>
      %c0_14 = arith.constant 0 : index
      %c0_15 = arith.constant 0 : index
      %22 = vector.load %arg5[%c0_14, %c0_15] : memref<1x128xf32, #tpu.memory_space<vmem>>, vector<1x128xf32>
      %23 = vector.broadcast %22 : vector<1x128xf32> to vector<32x128xf32>
      %24 = arith.addf %21, %23 : vector<32x128xf32>
      %cst_16 = arith.constant 0.000000e+00 : f32
      %25 = vector.broadcast %cst_16 : f32 to vector<32x128xf32>
      %26 = arith.maximumf %24, %25 : vector<32x128xf32>
      %c0_17 = arith.constant 0 : index
      %c0_18 = arith.constant 0 : index
      %27 = vector.load %arg6[%c0_17, %c0_18] : memref<32x128xf32, #tpu.memory_space<vmem>>, vector<32x128xf32>
      tpu.vector_store %arg6[%c0_17, %c0_18], %26 {strides = array<i32>} : memref<32x128xf32, #tpu.memory_space<vmem>>, vector<32x128xf32>,
    } else {
    }
    return
  }
  func.func @transform_0(%arg0: i32, %arg1: i32) -> (i32, i32, i32) {
    %c0_i32 = arith.constant 0 : i32
    %c0_i32_0 = arith.constant 0 : i32
    return %arg1, %arg0, %c0_i32 : i32, i32, i32
  }
  func.func @transform_1(%arg0: i32, %arg1: i32) -> (i32, i32, i32) {
    %c0_i32 = arith.constant 0 : i32
    %c0_i32_0 = arith.constant 0 : i32
    %c0_i32_1 = arith.constant 0 : i32
    %c0_i32_2 = arith.constant 0 : i32
    return %c0_i32, %c0_i32_0, %c0_i32_1 : i32, i32, i32
  }
  func.func @transform_2(%arg0: i32, %arg1: i32) -> (i32, i32, i32) {
    %c0_i32 = arith.constant 0 : i32
    %c0_i32_0 = arith.constant 0 : i32
    %c0_i32_1 = arith.constant 0 : i32
    return %c0_i32, %arg0, %c0_i32_0 : i32, i32, i32
  }
  func.func @transform_3(%arg0: i32, %arg1: i32) -> (i32, i32) {
    %c0_i32 = arith.constant 0 : i32
    %c0_i32_0 = arith.constant 0 : i32
    %c0_i32_1 = arith.constant 0 : i32
    return %c0_i32, %c0_i32_0 : i32, i32
  }
  func.func @transform_4(%arg0: i32, %arg1: i32) -> (i32, i32) {
    %c0_i32 = arith.constant 0 : i32
    %c0_i32_0 = arith.constant 0 : i32
    return %arg0, %c0_i32 : i32, i32
  }
}

</mosaic_0001>

<llo_original>
// kernel: tpu_custom_call.1
$region0: #{tpu_custom_call.1}
  #allocation0 [shape = 'u32[]', space=smem, size = 0x4, offset = 0x4, fixed_abs, tag = 'smem constant byte address 0x4 - core index']
  #allocation1 [shape = 'u32[144,128]{1,0:T(1,128)}', space=vmem, size = 0x12000, scoped, tag = 'internal scratch']
  %s0 = inlined_call_operand.vmem [shape: s8[3,64,64], index: 0, kind: input, shape index: {}]
  %s1 = inlined_call_operand.vmem [shape: bf16[3,64,128], index: 1, kind: input, shape index: {}]
  %s2 = inlined_call_operand.vmem [shape: f32[3,64,1], index: 2, kind: input, shape index: {}]
  %s3 = inlined_call_operand.vmem [shape: f32[1,128], index: 3, kind: input, shape index: {}]
  %s4 = inlined_call_operand.hbm [shape: f32[64,128], index: 4, kind: output, shape index: {}]
  %s5 = sld [smem:[#allocation0]]
  $region95: #{tpu_custom_call.1} parent=0
    _
  %s7 = ssub.s32 1, %s5
  %s8 = scalar_select 0, %s7, %s5
  $region1: #{tpu_custom_call.1} parent=0
    #allocation2 [shape = 'u8[98304]{0}', space=vmem, size = 0x18000, scoped, tag = 'input window, operand 2']
    #allocation3 [shape = 'u8[32768]{0}', space=vmem, size = 0x8000, scoped, tag = 'output window, operand 0']
    #allocation4 [shape = 's32[2]{0}', space=sflag, size = 0x8, scoped, tag = 'scoped memory for tpu_custom_call.1']
    %9 = vsyncpa [#allocation4], 0
    %s10 = scalar_lea.sflag [#allocation4], 1
    %11 = vsyncpa %s10, 0
    loop: start=0, step=1, limit=8
    $region2: #{tpu_custom_call.1} parent=1 // loop_pre_header
      _
    $region3: #{tpu_custom_call.1} parent=1 // loop_header
      %s13 = sphi 0, %s17
      %p14 = scmp.ge.s32.totalorder %s13, 8
      %s20 = sphi 0, %s32
      %s21 = sphi 0, %s28
      %s22 = sphi 0, %s20
      %s23 = sphi 0, %s21
      %s24 = sphi 0, %s22
      %s25 = sphi 0, %s23
      %s37 = sphi 0, %s39
      %s40 = sphi 0, %s37
      %s41 = sphi 0, %s40
      %s57 = sphi 0, %s41
      %s61 = sphi 0, %s61
      %s63 = sphi 0, %s61
      %s64 = sphi 0, %s63
      %s78 = sphi 0, %s64
      %s84 = sphi 0, %s86
      %s87 = sphi 0, %s84
      %s88 = sphi 0, %s87
      %s104 = sphi 0, %s88
      %s108 = sphi 0, %s108
      %s110 = sphi 0, %s108
      %s111 = sphi 0, %s110
      %s125 = sphi 0, %s111
      %s131 = sphi 0, %s133
      %s134 = sphi 0, %s131
      %s135 = sphi 0, %s134
      %s151 = sphi 0, %s135
    $region4: #{tpu_custom_call.1} parent=1 // loop_header_branch
      %16 = sbr.rel (%p14) target = $region8
    $region5: #{tpu_custom_call.1} parent=1 // loop_body
      %s18 = ssub.s32 %s13, 1
      %s19 = ssub.s32 %s13, 2
      %s26 = sadd.s32 1, %s21
      %p27 = scmp.ge.s32.totalorder %s26, 3
      %s28 = scalar_select %p27, 0, %s26
      %s29 = sadd.s32 1, %s20
      %s30 = scalar_select %p27, %s29, %s20
      %p31 = scmp.ge.s32.totalorder %s30, 2
      %s32 = scalar_select %p31, 0, %s30
      %s33 = ssub.s32 %s21, %s28
      %s34 = ssub.s32 %s20, %s32
      %s35 = sor.u32 %s33, %s34
      %p36 = scmp.eq.s32.totalorder %s35, 0
      %s38 = sadd.s32 %s37, 1
      %s39 = scalar_select %p36, %s37, %s38
      %p42 = pneg %p36
      %p43 = scmp.eq.s32.totalorder %s13, 5
      %p44 = por %p42, %p43
      %p45 = scmp.ne.s32.totalorder %s37, %s40
      %p46 = scmp.eq.s32.totalorder %s13, 0
      %p47 = por %p45, %p46
      %p48 = scmp.ne.s32.totalorder %s37, %s40
      %p49 = scmp.eq.s32.totalorder %s18, 5
      %p50 = por %p48, %p49
      %p51 = scmp.ne.s32.totalorder %s40, %s41
      %p52 = scmp.eq.s32.totalorder %s18, 0
      %p53 = por %p51, %p52
      %p54 = scmp.ne.s32.totalorder %s40, %s41
      %p55 = scmp.eq.s32.totalorder %s19, 5
      %p56 = por %p54, %p55
      %p58 = scmp.ne.s32.totalorder %s41, %s57
      %p59 = scmp.eq.s32.totalorder %s19, 0
      %p60 = por %p58, %p59
      %s62 = sadd.s32 %s61, 1
      %p65 = scmp.eq.s32.totalorder %s13, 5
      %p66 = scmp.ne.s32.totalorder %s61, %s63
      %p67 = scmp.eq.s32.totalorder %s13, 0
      %p68 = por %p66, %p67
      %p69 = scmp.ne.s32.totalorder %s61, %s63
      %p70 = scmp.eq.s32.totalorder %s18, 5
      %p71 = por %p69, %p70
      %p72 = scmp.ne.s32.totalorder %s63, %s64
      %p73 = scmp.eq.s32.totalorder %s18, 0
      %p74 = por %p72, %p73
      %p75 = scmp.ne.s32.totalorder %s63, %s64
      %p76 = scmp.eq.s32.totalorder %s19, 5
      %p77 = por %p75, %p76
      %p79 = scmp.ne.s32.totalorder %s64, %s78
      %p80 = scmp.eq.s32.totalorder %s19, 0
      %p81 = por %p79, %p80
      %s82 = ssub.s32 %s20, %s32
      %p83 = scmp.eq.s32.totalorder %s82, 0
      %s85 = sadd.s32 %s84, 1
      %s86 = scalar_select %p83, %s84, %s85
      %p89 = pneg %p83
      %p90 = scmp.eq.s32.totalorder %s13, 5
      %p91 = por %p89, %p90
      %p92 = scmp.ne.s32.totalorder %s84, %s87
      %p93 = scmp.eq.s32.totalorder %s13, 0
      %p94 = por %p92, %p93
      %p95 = scmp.ne.s32.totalorder %s84, %s87
      %p96 = scmp.eq.s32.totalorder %s18, 5
      %p97 = por %p95, %p96
      %p98 = scmp.ne.s32.totalorder %s87, %s88
      %p99 = scmp.eq.s32.totalorder %s18, 0
      %p100 = por %p98, %p99
      %p101 = scmp.ne.s32.totalorder %s87, %s88
      %p102 = scmp.eq.s32.totalorder %s19, 5
      %p103 = por %p101, %p102
      %p105 = scmp.ne.s32.totalorder %s88, %s104
      %p106 = scmp.eq.s32.totalorder %s19, 0
      %p107 = por %p105, %p106
      %s109 = sadd.s32 %s108, 1
      %p112 = scmp.eq.s32.totalorder %s13, 5
      %p113 = scmp.ne.s32.totalorder %s108, %s110
      %p114 = scmp.eq.s32.totalorder %s13, 0
      %p115 = por %p113, %p114
      %p116 = scmp.ne.s32.totalorder %s108, %s110
      %p117 = scmp.eq.s32.totalorder %s18, 5
      %p118 = por %p116, %p117
      %p119 = scmp.ne.s32.totalorder %s110, %s111
      %p120 = scmp.eq.s32.totalorder %s18, 0
      %p121 = por %p119, %p120
      %p122 = scmp.ne.s32.totalorder %s110, %s111
      %p123 = scmp.eq.s32.totalorder %s19, 5
      %p124 = por %p122, %p123
      %p126 = scmp.ne.s32.totalorder %s111, %s125
      %p127 = scmp.eq.s32.totalorder %s19, 0
      %p128 = por %p126, %p127
      %s129 = ssub.s32 %s20, %s32
      %p130 = scmp.eq.s32.totalorder %s129, 0
      %s132 = sadd.s32 %s131, 1
      %s133 = scalar_select %p130, %s131, %s132
      %p136 = pneg %p130
      %p137 = scmp.eq.s32.totalorder %s13, 5
      %p138 = por %p136, %p137
      %p139 = scmp.ne.s32.totalorder %s131, %s134
      %p140 = scmp.eq.s32.totalorder %s13, 0
      %p141 = por %p139, %p140
      %p142 = scmp.ne.s32.totalorder %s131, %s134
      %p143 = scmp.eq.s32.totalorder %s18, 5
      %p144 = por %p142, %p143
      %p145 = scmp.ne.s32.totalorder %s134, %s135
      %p146 = scmp.eq.s32.totalorder %s18, 0
      %p147 = por %p145, %p146
      %p148 = scmp.ne.s32.totalorder %s134, %s135
      %p149 = scmp.eq.s32.totalorder %s19, 5
      %p150 = por %p148, %p149
      %p152 = scmp.ne.s32.totalorder %s135, %s151
      %p153 = scmp.eq.s32.totalorder %s19, 0
      %p154 = por %p152, %p153
      %p155 = scmp.le.s32.totalorder 1, %s13
      %p156 = scmp.lt.s32.totalorder %s13, 7
      %p157 = pnand %p155, %p156
      %p158 = pneg %p157
      // Predicated region
      $region9: #{tpu_custom_call.1} parent=5 // pred_check
        _
      $region10: #{tpu_custom_call.1} parent=5 // pred_check_branch
        %160 = sbr.rel (%p157) target = $region12
      $region11: #{tpu_custom_call.1} parent=5 // pred_region
        %s161 = ssub.s32 %s13, 1
        // Predicated region
        $region13: #{tpu_custom_call.1} parent=11 // pred_check
          %p162 = pneg %p74
        $region14: #{tpu_custom_call.1} parent=11 // pred_check_branch
          %164 = sbr.rel (%p162) target = $region16
        $region15: #{tpu_custom_call.1} parent=11 // pred_region
          _
        $region16: #{tpu_custom_call.1} parent=11 // pred_fallthru
          _
        // Predicated region
        $region17: #{tpu_custom_call.1} parent=11 // pred_check
          %p165 = pneg %p121
        $region18: #{tpu_custom_call.1} parent=11 // pred_check_branch
          %167 = sbr.rel (%p165) target = $region20
        $region19: #{tpu_custom_call.1} parent=11 // pred_region
          _
        $region20: #{tpu_custom_call.1} parent=11 // pred_fallthru
          _
      $region12: #{tpu_custom_call.1} parent=5 // pred_fallthru
        _
      %p168 = scmp.lt.s32.totalorder %s13, 6
      // Predicated region
      $region21: #{tpu_custom_call.1} parent=5 // pred_check
        %p169 = pneg %p168
      $region22: #{tpu_custom_call.1} parent=5 // pred_check_branch
        %171 = sbr.rel (%p169) target = $region24
      $region23: #{tpu_custom_call.1} parent=5 // pred_region
        // Predicated region
        $region25: #{tpu_custom_call.1} parent=23 // pred_check
          %p172 = pneg %p47
        $region26: #{tpu_custom_call.1} parent=23 // pred_check_branch
          %174 = sbr.rel (%p172) target = $region28
        $region27: #{tpu_custom_call.1} parent=23 // pred_region
          %p175 = scmp.lt.s32.totalorder %s21, 2
          %s176 = scalar_select %p175, %s21, 2
          %p177 = scmp.lt.s32.totalorder %s20, 1
          %s178 = scalar_select %p177, %s20, 1
          %s179 = smul.addr %s176, 2
          %s180 = sadd.s32 %s178, %s179
          %s181 = smul.addr %s180, 8
          %s182 = scalar_lea.vmem %s0, %s181
        $region28: #{tpu_custom_call.1} parent=23 // pred_fallthru
          _
        // Predicated region
        $region29: #{tpu_custom_call.1} parent=23 // pred_check
          %p183 = pneg %p94
        $region30: #{tpu_custom_call.1} parent=23 // pred_check_branch
          %185 = sbr.rel (%p183) target = $region32
        $region31: #{tpu_custom_call.1} parent=23 // pred_region
          %s186 = sand.u32 %s84, 1
          %s187 = sand.u32 %s84, 1
          %s188 = smul.addr %s187, 96
          %s189 = scalar_lea.vmem [#allocation2], %s188
          %s190 = smul.u32 4, %s20
          %s191 = smul.addr %s190, 8
          %s192 = scalar_lea.vmem %s2, %s191
          // Predicated region
          $region33: #{tpu_custom_call.1} parent=31 // pred_check
            _
          $region34: #{tpu_custom_call.1} parent=31 // pred_check_branch
            %194 = sbr.rel (0) target = $region36
          $region35: #{tpu_custom_call.1} parent=31 // pred_region
            // Predicated region
            $region37: #{tpu_custom_call.1} parent=35 // pred_check
              _
            $region38: #{tpu_custom_call.1} parent=35 // pred_check_branch
              %196 = sbr.rel (0) target = $region40
            $region39: #{tpu_custom_call.1} parent=35 // pred_region
              // Predicated region
              $region52: #{tpu_custom_call.1} parent=39 // pred_check
                _
              $region53: #{tpu_custom_call.1} parent=39 // pred_check_branch
                %233 = sbr.rel (0) target = $region55
              $region54: #{tpu_custom_call.1} parent=39 // pred_region
                loop: start=0, step=1, limit=1
                $region56: #{tpu_custom_call.1} parent=54 // loop_pre_header
                  _
                $region57: #{tpu_custom_call.1} parent=54 // loop_header
                  %s235 = sphi 0, %s239
                  %p236 = scmp.ge.s32.totalorder %s235, 1
                  %s240 = sphi %s192, %s192
                  %s241 = sphi %s189, %s189
                $region58: #{tpu_custom_call.1} parent=54 // loop_header_branch
                  %238 = sbr.rel (%p236) target = $region62
                $region59: #{tpu_custom_call.1} parent=54 // loop_body
                  %v242 = vld [vmem:[%s240] sm:$0xff]
                  %243 = vst [vmem:[%s241] sm:$0xff] %v242
                  %v244 = vld [vmem:[%s240 + $0x8] sm:$0xff]
                  %245 = vst [vmem:[%s241 + $0x8] sm:$0xff] %v244
                  %v246 = vld [vmem:[%s240 + $0x10] sm:$0xff]
                  %247 = vst [vmem:[%s241 + $0x10] sm:$0xff] %v246
                  %v248 = vld [vmem:[%s240 + $0x18] sm:$0xff]
                  %249 = vst [vmem:[%s241 + $0x18] sm:$0xff] %v248
                  %v250 = vld [vmem:[%s240 + $0x40] sm:$0xff]
                  %251 = vst [vmem:[%s241 + $0x20] sm:$0xff] %v250
                  %v252 = vld [vmem:[%s240 + $0x48] sm:$0xff]
                  %253 = vst [vmem:[%s241 + $0x28] sm:$0xff] %v252
                  %v254 = vld [vmem:[%s240 + $0x50] sm:$0xff]
                  %255 = vst [vmem:[%s241 + $0x30] sm:$0xff] %v254
                  %v256 = vld [vmem:[%s240 + $0x58] sm:$0xff]
                  %257 = vst [vmem:[%s241 + $0x38] sm:$0xff] %v256
                  %v258 = vld [vmem:[%s240 + $0x80] sm:$0xff]
                  %259 = vst [vmem:[%s241 + $0x40] sm:$0xff] %v258
                  %v260 = vld [vmem:[%s240 + $0x88] sm:$0xff]
                  %261 = vst [vmem:[%s241 + $0x48] sm:$0xff] %v260
                  %v262 = vld [vmem:[%s240 + $0x90] sm:$0xff]
                  %263 = vst [vmem:[%s241 + $0x50] sm:$0xff] %v262
                  %v264 = vld [vmem:[%s240 + $0x98] sm:$0xff]
                  %265 = vst [vmem:[%s241 + $0x58] sm:$0xff] %v264
                $region60: #{tpu_custom_call.1} parent=54 // loop_footer
                  %s239 = sadd.s32 1, %s235
                $region61: #{tpu_custom_call.1} parent=54 // loop_footer_branch
                  %234 = sbr.rel target = $region57
                $region62: #{tpu_custom_call.1} parent=54 // loop_exit
                  _
              $region55: #{tpu_custom_call.1} parent=39 // pred_fallthru
                _
              // Predicated region
              $region63: #{tpu_custom_call.1} parent=39 // pred_check
                _
              $region64: #{tpu_custom_call.1} parent=39 // pred_check_branch
                %267 = sbr.rel target = $region66
              $region65: #{tpu_custom_call.1} parent=39 // pred_region
                _
              $region66: #{tpu_custom_call.1} parent=39 // pred_fallthru
                _
            $region40: #{tpu_custom_call.1} parent=35 // pred_fallthru
              _
            // Predicated region
            $region41: #{tpu_custom_call.1} parent=35 // pred_check
              _
            $region42: #{tpu_custom_call.1} parent=35 // pred_check_branch
              %198 = sbr.rel target = $region44
            $region43: #{tpu_custom_call.1} parent=35 // pred_region
              loop: start=0, step=1, limit=1
              $region45: #{tpu_custom_call.1} parent=43 // loop_pre_header
                _
              $region46: #{tpu_custom_call.1} parent=43 // loop_header
                %s201 = sphi 0, %s205
                %p202 = scmp.ge.s32.totalorder %s201, 1
                %s206 = sphi %s192, %s192
                %s207 = sphi %s189, %s189
              $region47: #{tpu_custom_call.1} parent=43 // loop_header_branch
                %204 = sbr.rel (%p202) target = $region51
              $region48: #{tpu_custom_call.1} parent=43 // loop_body
                %v208 = vld [vmem:[%s206] sm:$0xff]
                %209 = vst [vmem:[%s207] sm:$0xff] %v208
                %v210 = vld [vmem:[%s206 + $0x8] sm:$0xff]
                %211 = vst [vmem:[%s207 + $0x8] sm:$0xff] %v210
                %v212 = vld [vmem:[%s206 + $0x10] sm:$0xff]
                %213 = vst [vmem:[%s207 + $0x10] sm:$0xff] %v212
                %v214 = vld [vmem:[%s206 + $0x18] sm:$0xff]
                %215 = vst [vmem:[%s207 + $0x18] sm:$0xff] %v214
                %v216 = vld [vmem:[%s206 + $0x40] sm:$0xff]
                %217 = vst [vmem:[%s207 + $0x20] sm:$0xff] %v216
                %v218 = vld [vmem:[%s206 + $0x48] sm:$0xff]
                %219 = vst [vmem:[%s207 + $0x28] sm:$0xff] %v218
                %v220 = vld [vmem:[%s206 + $0x50] sm:$0xff]
                %221 = vst [vmem:[%s207 + $0x30] sm:$0xff] %v220
                %v222 = vld [vmem:[%s206 + $0x58] sm:$0xff]
                %223 = vst [vmem:[%s207 + $0x38] sm:$0xff] %v222
                %v224 = vld [vmem:[%s206 + $0x80] sm:$0xff]
                %225 = vst [vmem:[%s207 + $0x40] sm:$0xff] %v224
                %v226 = vld [vmem:[%s206 + $0x88] sm:$0xff]
                %227 = vst [vmem:[%s207 + $0x48] sm:$0xff] %v226
                %v228 = vld [vmem:[%s206 + $0x90] sm:$0xff]
                %229 = vst [vmem:[%s207 + $0x50] sm:$0xff] %v228
                %v230 = vld [vmem:[%s206 + $0x98] sm:$0xff]
                %231 = vst [vmem:[%s207 + $0x58] sm:$0xff] %v230
              $region49: #{tpu_custom_call.1} parent=43 // loop_footer
                %s205 = sadd.s32 1, %s201
              $region50: #{tpu_custom_call.1} parent=43 // loop_footer_branch
                %200 = sbr.rel target = $region46
              $region51: #{tpu_custom_call.1} parent=43 // loop_exit
                _
            $region44: #{tpu_custom_call.1} parent=35 // pred_fallthru
              _
          $region36: #{tpu_custom_call.1} parent=31 // pred_fallthru
            _
          %268 = vnop
        $region32: #{tpu_custom_call.1} parent=23 // pred_fallthru
          _
      $region24: #{tpu_custom_call.1} parent=5 // pred_fallthru
        _
      %p269 = scmp.le.s32.totalorder 1, %s13
      %p270 = scmp.lt.s32.totalorder %s13, 7
      %p271 = pnand %p269, %p270
      %p272 = pneg %p271
      // Predicated region
      $region67: #{tpu_custom_call.1} parent=5 // pred_check
        _
      $region68: #{tpu_custom_call.1} parent=5 // pred_check_branch
        %274 = sbr.rel (%p271) target = $region70
      $region69: #{tpu_custom_call.1} parent=5 // pred_region
        %s275 = ssub.s32 %s13, 1
        %s276 = sand.u32 %s87, 1
        %s277 = sand.u32 %s87, 1
        %s278 = smul.addr %s277, 96
        %s279 = scalar_lea.vmem [#allocation2], %s278
        // Predicated region
        $region71: #{tpu_custom_call.1} parent=69 // pred_check
          %p280 = pneg %p100
        $region72: #{tpu_custom_call.1} parent=69 // pred_check_branch
          %282 = sbr.rel (%p280) target = $region74
        $region73: #{tpu_custom_call.1} parent=69 // pred_region
          _
        $region74: #{tpu_custom_call.1} parent=69 // pred_fallthru
          _
        %p283 = scmp.lt.s32.totalorder %s23, 2
        %s284 = scalar_select %p283, %s23, 2
        %p285 = scmp.lt.s32.totalorder %s22, 1
        %s286 = scalar_select %p285, %s22, 1
        %s287 = smul.addr %s284, 2
        %s288 = sadd.s32 %s286, %s287
        %s289 = smul.addr %s288, 8
        %s290 = scalar_lea.vmem %s0, %s289
        %p291 = pneg %p53
        %p292 = pneg %p50
        %p293 = pneg %p74
        %p294 = pneg %p71
        %s295 = sand.u32 %s87, 1
        %s296 = sand.u32 %s87, 1
        %s297 = smul.addr %s296, 96
        %s298 = scalar_lea.vmem [#allocation2], %s297
        %p299 = pneg %p100
        %p300 = pneg %p97
        %p301 = pneg %p121
        %p302 = pneg %p118
        %p303 = pneg %p147
        %p304 = pneg %p144
        %s305 = sand.u32 %s134, 1
        %s306 = scalar_lea.sflag [#allocation4], %s305
        %s307 = sand.u32 %s134, 1
        %s308 = smul.addr %s307, 32
        %s309 = scalar_lea.vmem [#allocation3], %s308
        %p310 = scmp.lt.s32.totalorder %s23, 2
        %s311 = scalar_select %p310, %s23, 2
        %p312 = scmp.lt.s32.totalorder %s22, 1
        %s313 = scalar_select %p312, %s22, 1
        %s314 = smul.addr %s311, 2
        %s315 = sadd.s32 %s313, %s314
        %s316 = smul.addr %s315, 8
        %s317 = scalar_lea.vmem %s0, %s316
        %s318 = smul.u32 4, %s22
        %s319 = smul.u32 4, %s22
        %p321 = scmp.eq.s32.totalorder %s23, 0
        // Predicated region
        $region75: #{tpu_custom_call.1} parent=69 // pred_check
          %p322 = pneg %p321
        $region76: #{tpu_custom_call.1} parent=69 // pred_check_branch
          %324 = sbr.rel (%p322) target = $region78
        $region77: #{tpu_custom_call.1} parent=69 // pred_region
          %325 = vst [vmem:[%s309] sm:$0xff] 0.0
          %326 = vst [vmem:[%s309 + $0x8] sm:$0xff] 0.0
          %327 = vst [vmem:[%s309 + $0x10] sm:$0xff] 0.0
          %328 = vst [vmem:[%s309 + $0x18] sm:$0xff] 0.0
        $region78: #{tpu_custom_call.1} parent=69 // pred_fallthru
          _
        %v329 = vld [vmem:[%s317] sm:$0xff]
        %v330 = vunpack.c.l.s8.bf16 %v329
        %v331 = vunpack.c.h.s8.bf16 %v329
        %s332 = smul.u32 %s23, 8
        %s333 = smul.addr %s332, 4
        %s334 = scalar_lea.vmem %s1, %s333
        %v335 = vld [vmem:[%s334] sm:$0xf]
        %v336 = vld [vmem:[%s334 + $0x4] sm:$0xf]
        %v337 = vld [vmem:[%s334 + $0x8] sm:$0xf]
        %v338 = vld [vmem:[%s334 + $0xc] sm:$0xf]
        %v339 = vld [vmem:[%s334 + $0x10] sm:$0xf]
        %v340 = vld [vmem:[%s334 + $0x14] sm:$0xf]
        %v341 = vld [vmem:[%s334 + $0x18] sm:$0xf]
        %v342 = vld [vmem:[%s334 + $0x1c] sm:$0xf]
        %s343 = smul.u32 %s23, 32
        %s344 = scalar_lea.vmem %s279, %s343 [#allocation2]
        %v345 = vld [vmem:[%s344] sm:$0xff]
        %v346 = vld [vmem:[%s344 + $0x8] sm:$0xff]
        %v347 = vld [vmem:[%s344 + $0x10] sm:$0xff]
        %v348 = vld [vmem:[%s344 + $0x18] sm:$0xff]
        %v357 = vunpack.c.l.b16 %v335
        %v358 = vunpack.c.l.b16 %v336
        %v359 = vunpack.c.l.b16 %v337
        %v360 = vunpack.c.l.b16 %v338
        %v361 = vunpack.c.l.b16 %v339
        %v362 = vunpack.c.l.b16 %v340
        %v363 = vunpack.c.l.b16 %v341
        %v364 = vunpack.c.l.b16 %v342
        %v365 = vpack.c.b16 %v358, %v357
        %v366 = vpack.c.b16 %v360, %v359
        %v367 = vpack.c.b16 %v362, %v361
        %v368 = vpack.c.b16 %v364, %v363
        %vm373 = vcmask 523264
        %v375 = vsel %vm373, %v330, 0
        %v378 = vsel %vm373, %v331, 0
        %380 = vmatprep.subr.bf16.mxu0 0
        %381 = vmatpush1.bf16.msra.mxu0 %v365
        %382 = vmatprep.subr.bf16.mxu0 0
        %383 = vmatpush1.bf16.msra.mxu0 %v366
        %384 = vmatprep.subr.bf16.mxu0 0
        %385 = vmatpush1.bf16.msra.mxu0 %v367
        %386 = vmatprep.subr.bf16.mxu0 0
        %387 = vmatpush1.bf16.msra.mxu0 %v368
        %388 = vmatprep.subr.bf16.mxu0 0
        %389 = vmatpush1.bf16.msra.mxu0 0
        %390 = vmatprep.subr.bf16.mxu0 0
        %391 = vmatpush1.bf16.msra.mxu0 0
        %392 = vmatprep.subr.bf16.mxu0 0
        %393 = vmatpush1.bf16.msra.mxu0 0
        %394 = vmatprep.subr.bf16.mxu0 0
        %395 = vmatpush1.bf16.msra.mxu0 0
        %396 = vmatprep.subr.bf16.mxu0 0
        %397 = vmatpush1.bf16.msra.mxu0 0
        %398 = vmatprep.subr.bf16.mxu0 0
        %399 = vmatpush1.bf16.msra.mxu0 0
        %400 = vmatprep.subr.bf16.mxu0 0
        %401 = vmatpush1.bf16.msra.mxu0 0
        %402 = vmatprep.subr.bf16.mxu0 0
        %403 = vmatpush1.bf16.msra.mxu0 0
        %404 = vmatprep.subr.bf16.mxu0 0
        %405 = vmatpush1.bf16.msra.mxu0 0
        %406 = vmatprep.subr.bf16.mxu0 0
        %407 = vmatpush1.bf16.msra.mxu0 0
        %408 = vmatprep.subr.bf16.mxu0 0
        %409 = vmatpush1.bf16.msra.mxu0 0
        %410 = vmatprep.subr.bf16.mxu0 0
        %411 = vmatpush1.bf16.msra.mxu0 0
        %412 = vmatprep.mubr.bf16.mxu0 0
        %413 = vmatmul.mubr.bf16.gmra.mrb[0].mxu0 %v375
        %v414 = vpop.f32.mrb[0].mxu0
        %v415 = vadd.f32 0.0, %v414
        %v416 = vpop.f32.mrb[0].mxu0
        %v417 = vpop.f32.mrb[0].mxu0
        %v418 = vadd.f32 0.0, %v417
        %v419 = vpop.f32.mrb[0].mxu0
        %420 = vmatprep.mubr.bf16.mxu0 0
        %421 = vmatmul.mubr.bf16.gmra.mrb[0].mxu0 %v378
        %v422 = vpop.f32.mrb[0].mxu0
        %v423 = vadd.f32 0.0, %v422
        %v424 = vpop.f32.mrb[0].mxu0
        %v425 = vpop.f32.mrb[0].mxu0
        %v426 = vadd.f32 0.0, %v425
        %v427 = vpop.f32.mrb[0].mxu0
        %428 = vdwg.mxu0
        %v429 = vld [vmem:[%s309] sm:$0xff]
        %v430 = vld [vmem:[%s309 + $0x8] sm:$0xff]
        %v431 = vld [vmem:[%s309 + $0x10] sm:$0xff]
        %v432 = vld [vmem:[%s309 + $0x18] sm:$0xff]
        %434 = vset.pattern.permute.xlu0 0
        %435 = vperm.xlu0 %434, %v345
        %v436 = vpop.permute.xlu0 %435
        %439 = vset.pattern.permute.xlu0 0
        %440 = vperm.xlu0 %439, %v346
        %v441 = vpop.permute.xlu0 %440
        %444 = vset.pattern.permute.xlu0 0
        %445 = vperm.xlu0 %444, %v347
        %v446 = vpop.permute.xlu0 %445
        %449 = vset.pattern.permute.xlu0 0
        %450 = vperm.xlu0 %449, %v348
        %v451 = vpop.permute.xlu0 %450
        %v453 = vmul.f32 %v415, %v436
        %v454 = vmul.f32 %v418, %v441
        %v455 = vmul.f32 %v423, %v446
        %v456 = vmul.f32 %v426, %v451
        %v457 = vadd.f32 %v429, %v453
        %v458 = vadd.f32 %v430, %v454
        %v459 = vadd.f32 %v431, %v455
        %v460 = vadd.f32 %v432, %v456
        %461 = vst [vmem:[%s309] sm:$0xff] %v457
        %462 = vst [vmem:[%s309 + $0x8] sm:$0xff] %v458
        %463 = vst [vmem:[%s309 + $0x10] sm:$0xff] %v459
        %464 = vst [vmem:[%s309 + $0x18] sm:$0xff] %v460
        %p465 = scmp.eq.s32.totalorder %s23, 2
        // Predicated region
        $region79: #{tpu_custom_call.1} parent=69 // pred_check
          %p466 = pneg %p465
        $region80: #{tpu_custom_call.1} parent=69 // pred_check_branch
          %468 = sbr.rel (%p466) target = $region82
        $region81: #{tpu_custom_call.1} parent=69 // pred_region
          %v469 = vld [vmem:[%s309] sm:$0xff]
          %v470 = vld [vmem:[%s309 + $0x8] sm:$0xff]
          %v471 = vld [vmem:[%s309 + $0x10] sm:$0xff]
          %v472 = vld [vmem:[%s309 + $0x18] sm:$0xff]
          %v473 = vld [vmem:[%s3] sm:$0x1]
          %v475 = vlaneseq
          %v476 = vshrl.u32 %v475, 7
          %v477 = vsub.s32 0, %v476
          %v478 = vrot.slane %v473, %v477
          %v480 = vadd.f32 %v469, %v478
          %v481 = vadd.f32 %v470, %v478
          %v482 = vadd.f32 %v471, %v478
          %v483 = vadd.f32 %v472, %v478
          %v484 = vmax.f32 %v480, 0.0
          %v485 = vmax.f32 %v481, 0.0
          %v486 = vmax.f32 %v482, 0.0
          %v487 = vmax.f32 %v483, 0.0
          %488 = vst [vmem:[%s309] sm:$0xff] %v484
          %489 = vst [vmem:[%s309 + $0x8] sm:$0xff] %v485
          %490 = vst [vmem:[%s309 + $0x10] sm:$0xff] %v486
          %491 = vst [vmem:[%s309 + $0x18] sm:$0xff] %v487
        $region82: #{tpu_custom_call.1} parent=69 // pred_fallthru
          _
        %s492 = sand.u32 %s134, 1
        %s493 = scalar_lea.sflag [#allocation4], %s492
        %s494 = sand.u32 %s134, 1
        %s495 = smul.addr %s494, 32
        %s496 = scalar_lea.vmem [#allocation3], %s495
        // Predicated region
        $region83: #{tpu_custom_call.1} parent=69 // pred_check
          %p497 = pneg %p144
        $region84: #{tpu_custom_call.1} parent=69 // pred_check_branch
          %499 = sbr.rel (%p497) target = $region86
        $region85: #{tpu_custom_call.1} parent=69 // pred_region
          %s500 = smul.u32 4, %s22
          %s502 = ssub.s32 512, 512
          %503 = vsyncadd %s493, %s502
          %s504 = smul.addr %s500, 128
          %s505 = scalar_lea.hbm %s4, %s504
          %s506 = sshll.u32 %s496, 4
          %s507 = int_to_ptr.vmem [resolvable:$true] %s506
          %512 = dma.vmem_to_hbm [thread:$0]  %s507, 512, %s505, %s493, 128, 128, 8
        $region86: #{tpu_custom_call.1} parent=69 // pred_fallthru
          _
      $region70: #{tpu_custom_call.1} parent=5 // pred_fallthru
        _
      %p513 = scmp.le.s32.totalorder 2, %s13
      // Predicated region
      $region87: #{tpu_custom_call.1} parent=5 // pred_check
        %p514 = pneg %p513
      $region88: #{tpu_custom_call.1} parent=5 // pred_check_branch
        %516 = sbr.rel (%p514) target = $region90
      $region89: #{tpu_custom_call.1} parent=5 // pred_region
        %s517 = ssub.s32 %s13, 2
        // Predicated region
        $region91: #{tpu_custom_call.1} parent=89 // pred_check
          %p518 = pneg %p150
        $region92: #{tpu_custom_call.1} parent=89 // pred_check_branch
          %520 = sbr.rel (%p518) target = $region94
        $region93: #{tpu_custom_call.1} parent=89 // pred_region
          %s521 = sand.u32 %s135, 1
          %s522 = scalar_lea.sflag [#allocation4], %s521
          %s523 = sand.u32 %s135, 1
          %s524 = smul.addr %s523, 32
          %s525 = scalar_lea.vmem [#allocation3], %s524
          %526 = dma.done %s522, 512
        $region94: #{tpu_custom_call.1} parent=89 // pred_fallthru
          _
      $region90: #{tpu_custom_call.1} parent=5 // pred_fallthru
        _
    $region6: #{tpu_custom_call.1} parent=1 // loop_footer
      %s17 = sadd.s32 1, %s13
    $region7: #{tpu_custom_call.1} parent=1 // loop_footer_branch
      %12 = sbr.rel target = $region3
    $region8: #{tpu_custom_call.1} parent=1 // loop_exit
      _
    %527 = vsyncpa [#allocation4], 1
    %s528 = scalar_lea.sflag [#allocation4], 1
    %529 = vsyncpa %s528, 1

</llo_original>
